<compile_context>
chip_gen: v7x
topology: tpu7x:2x2x1
jax: 0.10.0
libtpu: 0.0.40
codegen_flags: <defaults>
</compile_context>

<pallas_src>
import jax
import jax.numpy as jnp
from jax.experimental import pallas as pl
from jax.experimental.pallas import tpu as pltpu

_LOG2_E = 1.4426950408889634  # exp(x) == exp2(x * log2(e))


def _make_kernel_gn(c2: float, out_dtype):
    """Lane-dense kernel: out block is (G, tile_n)."""

    def kernel(dist_ref, offset_ref, out_ref):
        # dist_ref  : VMEM (1, tn)   (sublane-broadcast across G)
        # offset_ref: VMEM (G, 1)    (lane-broadcast across tn; resident)
        # out_ref   : VMEM (G, tn)   (last dim multiple of 128 -> unmasked vst)
        diff = dist_ref[...] - offset_ref[...]            # (G, tn)
        out_ref[...] = jnp.exp2(c2 * (diff * diff)).astype(out_dtype)

    return kernel


def _make_kernel_ng(c2: float, out_dtype):
    """Module-contract layout kernel: out block is (tile_n, G)."""

    def kernel(dist_ref, offset_ref, out_ref):
        # dist_ref  : VMEM (tn, 1)
        # offset_ref: VMEM (1, G)    (resident, same block every step)
        # out_ref   : VMEM (tn, G)   (G=50 < 128 -> masked partial stores)
        diff = dist_ref[...] - offset_ref[...]            # (tn, G)
        out_ref[...] = jnp.exp2(c2 * (diff * diff)).astype(out_dtype)

    return kernel


def _choose_tile_n(n: int, requested: int, align: int) -> int:
    """Tile along N.

    Targets >= 4 grid steps when N is large enough (>= 2 steps per v7x
    TensorCore under dimension_semantics=("parallel",)), with a floor of 512
    so per-step overhead (~0.35 us) stays amortized, rounded up to the lane
    (128, layout="gn") or sublane (8, layout="ng") alignment.  A single
    full-extent block is used when N is small (full dims are always legal).
    """
    target = max(512, -(-n // 4))
    tile = min(int(requested), target)
    tile = -(-tile // align) * align
    if tile >= n:
        return n
    return tile


def gaussian_basis(dist, offset, coeff, *, layout="ng", tile_n=4096,
                   out_dtype=jnp.float32):
    """dist: [N] or [N, 1] f32; offset: [G] f32; coeff: python float.

    layout="ng" -> [N, G] (PyTorch contract); layout="gn" -> [G, N]
    (lane-dense fast path for consumers that can contract over axis 0).
    """
    dist = jnp.asarray(dist, jnp.float32).reshape(-1)
    offset = jnp.asarray(offset, jnp.float32).reshape(-1)
    N = dist.shape[0]
    G = offset.shape[0]
    c2 = float(coeff) * _LOG2_E  # fold coeff and log2(e) into one constant

    compiler_params = pltpu.CompilerParams(
        dimension_semantics=("parallel",),
        vmem_limit_bytes=32 * 1024 * 1024,
    )

    if layout == "gn":
        tn = _choose_tile_n(N, tile_n, 128)
        grid = (pl.cdiv(N, tn),)                     # partial last block is masked
        kernel = _make_kernel_gn(c2, out_dtype)
        return pl.pallas_call(
            kernel,
            out_shape=jax.ShapeDtypeStruct((G, N), out_dtype),
            grid=grid,
            in_specs=[
                pl.BlockSpec((1, tn), lambda i: (0, i)),   # dist row tile
                pl.BlockSpec((G, 1), lambda i: (0, 0)),    # offset column (resident)
            ],
            # Optional sweep: pipeline_mode=pl.Buffered(3) here if xprof shows
            # exposed output writeback (verify on a trace before keeping).
            out_specs=pl.BlockSpec((G, tn), lambda i: (0, i)),
            compiler_params=compiler_params,
        )(dist.reshape(1, N), offset.reshape(G, 1))

    if layout == "ng":
        tn = _choose_tile_n(N, tile_n, 8)
        grid = (pl.cdiv(N, tn),)
        kernel = _make_kernel_ng(c2, out_dtype)
        return pl.pallas_call(
            kernel,
            out_shape=jax.ShapeDtypeStruct((N, G), out_dtype),
            grid=grid,
            in_specs=[
                pl.BlockSpec((tn, 1), lambda i: (i, 0)),   # dist tile along N
                pl.BlockSpec((1, G), lambda i: (0, 0)),    # full offset row (resident)
            ],
            out_specs=pl.BlockSpec((tn, G), lambda i: (i, 0)),
            compiler_params=compiler_params,
        )(dist.reshape(N, 1), offset.reshape(1, G))

    raise ValueError(f"layout must be 'ng' or 'gn', got {layout!r}")


class GaussianBasisPallas:
    """Deterministic re-implementation of the PyTorch module's buffers."""

    def __init__(self, r_max: float, num_gaussians: int = 50, trainable: bool = False):
        # `trainable` only changes whether offset is a learned Parameter in
        # PyTorch; the forward math is identical, so it is ignored here.
        del trainable
        self.offset = jnp.linspace(0.0, r_max, num_gaussians, dtype=jnp.float32)
        self.coeff = float(-0.5 / (r_max / (num_gaussians - 1)) ** 2)
        self.r_max = float(r_max)

    def __call__(self, dist, *, layout="ng", out_dtype=jnp.float32):
        # out_dtype=jnp.bfloat16 halves the dominant HBM write stream
        # (recommended on v6e/v7x when the consumer accepts bf16); it changes
        # the output dtype contract, so it stays an explicit knob.
        return gaussian_basis(dist, self.offset, self.coeff,
                              layout=layout, out_dtype=out_dtype)


if __name__ == "__main__":
    r_max = 5.0
    num_gaussians = 50
    # Deliberately NOT a multiple of 8 or 128: exercises the pl.cdiv
    # partial-last-block path in both layouts.
    n_edges = 1003

    key = jax.random.PRNGKey(0)
    dist = jax.random.uniform(
        key, (n_edges, 1), dtype=jnp.float32, minval=0.0, maxval=r_max)

    module = GaussianBasisPallas(r_max, num_gaussians)

    # Pure-JAX reference for correctness.
    ref = jnp.exp(module.coeff * (dist - module.offset[None, :]) ** 2)  # [N, G]

    # 1) Default path: PyTorch contract ([N, G], f32).
    out_ng = jax.block_until_ready(module(dist))
    assert out_ng.shape == (n_edges, num_gaussians)
    assert out_ng.dtype == jnp.float32
    assert jnp.allclose(out_ng, ref, atol=1e-5, rtol=1e-5)

    # 2) Lane-dense fast path ([G, N], f32).
    out_gn = jax.block_until_ready(module(dist, layout="gn"))
    assert out_gn.shape == (num_gaussians, n_edges)
    assert jnp.allclose(out_gn, ref.T, atol=1e-5, rtol=1e-5)

    # 3) bf16-output knob (lane-dense): exp still computed in f32.
    out_bf = jax.block_until_ready(module(dist, layout="gn", out_dtype=jnp.bfloat16))
    assert out_bf.dtype == jnp.bfloat16
    assert jnp.allclose(out_bf.astype(jnp.float32), ref.T, atol=1e-2, rtol=1e-2)

    print("KERNEL_OK")
</pallas_src>

<mosaic_0001>
module attributes {stable_mosaic.version = 11 : i64} {
  func.func @kernel(%arg0: i32, %arg1: memref<512x1xf32, #tpu.memory_space<vmem>>, %arg2: memref<1x50xf32, #tpu.memory_space<vmem>>, %arg3: memref<512x50xf32, #tpu.memory_space<vmem>>) attributes {dimension_semantics = [#tpu.dimension_semantics<parallel>], iteration_bounds = array<i64: 2>, scalar_prefetch = 0 : i64, scratch_operands = 0 : i64, tpu.core_type = #tpu.core_type<tc>, window_params = [{transform_indices = @transform_0, window_bounds = array<i64: 512, 1>}, {pipeline_mode = #tpu.pipeline_mode<synchronous>, transform_indices = @transform_1, window_bounds = array<i64: 1, 50>}, {transform_indices = @transform_2, window_bounds = array<i64: 512, 50>}]} {
    %c0 = arith.constant 0 : index
    %c0_0 = arith.constant 0 : index
    %0 = vector.load %arg1[%c0, %c0_0] : memref<512x1xf32, #tpu.memory_space<vmem>>, vector<512x1xf32>
    %c0_1 = arith.constant 0 : index
    %c0_2 = arith.constant 0 : index
    %1 = vector.load %arg2[%c0_1, %c0_2] : memref<1x50xf32, #tpu.memory_space<vmem>>, vector<1x50xf32>
    %2 = vector.broadcast %0 : vector<512x1xf32> to vector<512x50xf32>
    %3 = vector.broadcast %1 : vector<1x50xf32> to vector<512x50xf32>
    %4 = arith.subf %2, %3 : vector<512x50xf32>
    %5 = arith.mulf %4, %4 : vector<512x50xf32>
    %cst = arith.constant -69.2782135 : f32
    %6 = vector.broadcast %cst : f32 to vector<512x50xf32>
    %7 = arith.mulf %6, %5 : vector<512x50xf32>
    %8 = math.exp2 %7 : vector<512x50xf32>
    %c0_3 = arith.constant 0 : index
    %c0_4 = arith.constant 0 : index
    %9 = vector.load %arg3[%c0_3, %c0_4] : memref<512x50xf32, #tpu.memory_space<vmem>>, vector<512x50xf32>
    tpu.vector_store %arg3[%c0_3, %c0_4], %8 {strides = array<i32>} : memref<512x50xf32, #tpu.memory_space<vmem>>, vector<512x50xf32>,
    return
  }
  func.func @transform_0(%arg0: i32) -> (i32, i32) {
    %c0_i32 = arith.constant 0 : i32
    %c0_i32_0 = arith.constant 0 : i32
    return %arg0, %c0_i32 : i32, i32
  }
  func.func @transform_1(%arg0: i32) -> (i32, i32) {
    %c0_i32 = arith.constant 0 : i32
    %c0_i32_0 = arith.constant 0 : i32
    %c0_i32_1 = arith.constant 0 : i32
    return %c0_i32, %c0_i32_0 : i32, i32
  }
  func.func @transform_2(%arg0: i32) -> (i32, i32) {
    %c0_i32 = arith.constant 0 : i32
    %c0_i32_0 = arith.constant 0 : i32
    return %arg0, %c0_i32 : i32, i32
  }
}

</mosaic_0001>

<llo_original>
// kernel: tpu_custom_call.1
$region0: #{tpu_custom_call.1}
  #allocation0 [shape = 'u32[]', space=smem, size = 0x4, offset = 0x4, fixed_abs, tag = 'smem constant byte address 0x4 - core index']
  #allocation1 [shape = 'u32[144,128]{1,0:T(1,128)}', space=vmem, size = 0x12000, scoped, tag = 'internal scratch']
  %s0 = inlined_call_operand.vmem [shape: f32[1003,1], index: 0, kind: input, shape index: {}]
  %s1 = inlined_call_operand.vmem [shape: f32[1,50], index: 1, kind: input, shape index: {}]
  %s2 = inlined_call_operand.vmem [shape: f32[1003,50], index: 2, kind: output, shape index: {}]
  %s3 = sld [smem:[#allocation0]]
  $region89: #{tpu_custom_call.1} parent=0
    _
  %s5 = ssub.s32 1, %s3
  %s6 = scalar_select 0, %s5, %s3
  $region1: #{tpu_custom_call.1} parent=0
    #allocation2 [shape = 'u8[524288]{0}', space=vmem, size = 0x80000, scoped, tag = 'output window, operand 0']
    loop: start=0, step=1, limit=4
    $region2: #{tpu_custom_call.1} parent=1 // loop_pre_header
      _
    $region3: #{tpu_custom_call.1} parent=1 // loop_header
      %s8 = sphi 0, %s12
      %p9 = scmp.ge.s32.totalorder %s8, 4
      %s18 = sphi 0, %s20
      %s21 = sphi 0, %s18
      %s22 = sphi 0, %s21
      %s38 = sphi 0, %s22
      %s42 = sphi 0, %s42
      %s44 = sphi 0, %s42
      %s45 = sphi 0, %s44
      %s59 = sphi 0, %s45
      %s65 = sphi 0, %s67
      %s68 = sphi 0, %s65
      %s69 = sphi 0, %s68
      %s85 = sphi 0, %s69
    $region4: #{tpu_custom_call.1} parent=1 // loop_header_branch
      %11 = sbr.rel (%p9) target = $region8
    $region5: #{tpu_custom_call.1} parent=1 // loop_body
      %s13 = ssub.s32 %s8, 1
      %s14 = ssub.s32 %s8, 2
      %s15 = sadd.s32 %s8, 1
      %s16 = ssub.s32 %s8, %s15
      %p17 = scmp.eq.s32.totalorder %s16, 0
      %s19 = sadd.s32 %s18, 1
      %s20 = scalar_select %p17, %s18, %s19
      %p23 = pneg %p17
      %p24 = scmp.eq.s32.totalorder %s8, 1
      %p25 = por %p23, %p24
      %p26 = scmp.ne.s32.totalorder %s18, %s21
      %p27 = scmp.eq.s32.totalorder %s8, 0
      %p28 = por %p26, %p27
      %p29 = scmp.ne.s32.totalorder %s18, %s21
      %p30 = scmp.eq.s32.totalorder %s13, 1
      %p31 = por %p29, %p30
      %p32 = scmp.ne.s32.totalorder %s21, %s22
      %p33 = scmp.eq.s32.totalorder %s13, 0
      %p34 = por %p32, %p33
      %p35 = scmp.ne.s32.totalorder %s21, %s22
      %p36 = scmp.eq.s32.totalorder %s14, 1
      %p37 = por %p35, %p36
      %p39 = scmp.ne.s32.totalorder %s22, %s38
      %p40 = scmp.eq.s32.totalorder %s14, 0
      %p41 = por %p39, %p40
      %s43 = sadd.s32 %s42, 1
      %p46 = scmp.eq.s32.totalorder %s8, 1
      %p47 = scmp.ne.s32.totalorder %s42, %s44
      %p48 = scmp.eq.s32.totalorder %s8, 0
      %p49 = por %p47, %p48
      %p50 = scmp.ne.s32.totalorder %s42, %s44
      %p51 = scmp.eq.s32.totalorder %s13, 1
      %p52 = por %p50, %p51
      %p53 = scmp.ne.s32.totalorder %s44, %s45
      %p54 = scmp.eq.s32.totalorder %s13, 0
      %p55 = por %p53, %p54
      %p56 = scmp.ne.s32.totalorder %s44, %s45
      %p57 = scmp.eq.s32.totalorder %s14, 1
      %p58 = por %p56, %p57
      %p60 = scmp.ne.s32.totalorder %s45, %s59
      %p61 = scmp.eq.s32.totalorder %s14, 0
      %p62 = por %p60, %p61
      %s63 = ssub.s32 %s8, %s15
      %p64 = scmp.eq.s32.totalorder %s63, 0
      %s66 = sadd.s32 %s65, 1
      %s67 = scalar_select %p64, %s65, %s66
      %p70 = pneg %p64
      %p71 = scmp.eq.s32.totalorder %s8, 1
      %p72 = por %p70, %p71
      %p73 = scmp.ne.s32.totalorder %s65, %s68
      %p74 = scmp.eq.s32.totalorder %s8, 0
      %p75 = por %p73, %p74
      %p76 = scmp.ne.s32.totalorder %s65, %s68
      %p77 = scmp.eq.s32.totalorder %s13, 1
      %p78 = por %p76, %p77
      %p79 = scmp.ne.s32.totalorder %s68, %s69
      %p80 = scmp.eq.s32.totalorder %s13, 0
      %p81 = por %p79, %p80
      %p82 = scmp.ne.s32.totalorder %s68, %s69
      %p83 = scmp.eq.s32.totalorder %s14, 1
      %p84 = por %p82, %p83
      %p86 = scmp.ne.s32.totalorder %s69, %s85
      %p87 = scmp.eq.s32.totalorder %s14, 0
      %p88 = por %p86, %p87
      %p89 = scmp.le.s32.totalorder 1, %s8
      %p90 = scmp.lt.s32.totalorder %s8, 3
      %p91 = pnand %p89, %p90
      %p92 = pneg %p91
      // Predicated region
      $region9: #{tpu_custom_call.1} parent=5 // pred_check
        _
      $region10: #{tpu_custom_call.1} parent=5 // pred_check_branch
        %94 = sbr.rel (%p91) target = $region12
      $region11: #{tpu_custom_call.1} parent=5 // pred_region
        %s95 = ssub.s32 %s8, 1
        // Predicated region
        $region13: #{tpu_custom_call.1} parent=11 // pred_check
          %p96 = pneg %p55
        $region14: #{tpu_custom_call.1} parent=11 // pred_check_branch
          %98 = sbr.rel (%p96) target = $region16
        $region15: #{tpu_custom_call.1} parent=11 // pred_region
          _
        $region16: #{tpu_custom_call.1} parent=11 // pred_fallthru
          _
      $region12: #{tpu_custom_call.1} parent=5 // pred_fallthru
        _
      %p99 = scmp.lt.s32.totalorder %s8, 2
      // Predicated region
      $region17: #{tpu_custom_call.1} parent=5 // pred_check
        %p100 = pneg %p99
      $region18: #{tpu_custom_call.1} parent=5 // pred_check_branch
        %102 = sbr.rel (%p100) target = $region20
      $region19: #{tpu_custom_call.1} parent=5 // pred_region
        // Predicated region
        $region21: #{tpu_custom_call.1} parent=19 // pred_check
          %p103 = pneg %p28
        $region22: #{tpu_custom_call.1} parent=19 // pred_check_branch
          %105 = sbr.rel (%p103) target = $region24
        $region23: #{tpu_custom_call.1} parent=19 // pred_region
          %s106 = smul.u32 64, %s8
          %s107 = ssub.s32 126, %s106
          %p108 = scmp.lt.s32.totalorder %s107, 64
          %s109 = scalar_select %p108, %s107, 64
          %s110 = smul.u32 128, %s109
          %p111 = scmp.lt.s32.totalorder %s106, 125
          %s112 = scalar_select %p111, %s106, 125
          %s113 = smul.addr %s112, 8
          %s114 = scalar_lea.vmem %s0, %s113
          %s115 = smul.u32 64, %s8
          %s116 = ssub.s32 126, %s115
          %p117 = scmp.lt.s32.totalorder %s116, 64
          %s118 = scalar_select %p117, %s116, 64
          %s119 = smul.u32 128, %s118
        $region24: #{tpu_custom_call.1} parent=19 // pred_fallthru
          _
      $region20: #{tpu_custom_call.1} parent=5 // pred_fallthru
        _
      %p120 = scmp.le.s32.totalorder 1, %s8
      %p121 = scmp.lt.s32.totalorder %s8, 3
      %p122 = pnand %p120, %p121
      %p123 = pneg %p122
      // Predicated region
      $region25: #{tpu_custom_call.1} parent=5 // pred_check
        _
      $region26: #{tpu_custom_call.1} parent=5 // pred_check_branch
        %125 = sbr.rel (%p122) target = $region28
      $region27: #{tpu_custom_call.1} parent=5 // pred_region
        %s126 = ssub.s32 %s8, 1
        %s127 = smul.u32 64, %s13
        %s128 = ssub.s32 126, %s127
        %p129 = scmp.lt.s32.totalorder %s128, 64
        %s130 = scalar_select %p129, %s128, 64
        %s131 = smul.u32 128, %s130
        %p132 = scmp.lt.s32.totalorder %s127, 125
        %s133 = scalar_select %p132, %s127, 125
        %s134 = smul.addr %s133, 8
        %s135 = scalar_lea.vmem %s0, %s134
        %p136 = pneg %p34
        %p137 = pneg %p31
        %p138 = pneg %p55
        %p139 = pneg %p52
        %p140 = pneg %p81
        %p141 = pneg %p78
        %s142 = sand.u32 %s68, 1
        %s143 = sand.u32 %s68, 1
        %s144 = smul.addr %s143, 512
        %s145 = scalar_lea.vmem [#allocation2], %s144
        %s146 = smul.u32 64, %s13
        %s147 = ssub.s32 126, %s146
        %p148 = scmp.lt.s32.totalorder %s147, 64
        %s149 = scalar_select %p148, %s147, 64
        %s150 = smul.u32 128, %s149
        %p151 = scmp.lt.s32.totalorder %s146, 125
        %s152 = scalar_select %p151, %s146, 125
        %s153 = smul.addr %s152, 8
        %s154 = scalar_lea.vmem %s0, %s153
        %s155 = smul.u32 64, %s13
        %s156 = ssub.s32 126, %s155
        %p157 = scmp.lt.s32.totalorder %s156, 64
        %s158 = scalar_select %p157, %s156, 64
        %s159 = smul.u32 128, %s158
        %s160 = smul.u32 64, %s13
        %s161 = ssub.s32 126, %s160
        %p162 = scmp.lt.s32.totalorder %s161, 64
        %s163 = scalar_select %p162, %s161, 64
        %s164 = smul.u32 128, %s163
        %v165 = vld [vmem:[%s154] sm:$0xff]
        %v166 = vld [vmem:[%s154 + $0x8] sm:$0xff]
        %v167 = vld [vmem:[%s154 + $0x10] sm:$0xff]
        %v168 = vld [vmem:[%s154 + $0x18] sm:$0xff]
        %v169 = vld [vmem:[%s154 + $0x20] sm:$0xff]
        %v170 = vld [vmem:[%s154 + $0x28] sm:$0xff]
        %v171 = vld [vmem:[%s154 + $0x30] sm:$0xff]
        %v172 = vld [vmem:[%s154 + $0x38] sm:$0xff]
        %v173 = vld [vmem:[%s154 + $0x40] sm:$0xff]
        %v174 = vld [vmem:[%s154 + $0x48] sm:$0xff]
        %v175 = vld [vmem:[%s154 + $0x50] sm:$0xff]
        %v176 = vld [vmem:[%s154 + $0x58] sm:$0xff]
        %v177 = vld [vmem:[%s154 + $0x60] sm:$0xff]
        %v178 = vld [vmem:[%s154 + $0x68] sm:$0xff]
        %v179 = vld [vmem:[%s154 + $0x70] sm:$0xff]
        %v180 = vld [vmem:[%s154 + $0x78] sm:$0xff]
        %v181 = vld [vmem:[%s154 + $0x80] sm:$0xff]
        %v182 = vld [vmem:[%s154 + $0x88] sm:$0xff]
        %v183 = vld [vmem:[%s154 + $0x90] sm:$0xff]
        %v184 = vld [vmem:[%s154 + $0x98] sm:$0xff]
        %v185 = vld [vmem:[%s154 + $0xa0] sm:$0xff]
        %v186 = vld [vmem:[%s154 + $0xa8] sm:$0xff]
        %v187 = vld [vmem:[%s154 + $0xb0] sm:$0xff]
        %v188 = vld [vmem:[%s154 + $0xb8] sm:$0xff]
        %v189 = vld [vmem:[%s154 + $0xc0] sm:$0xff]
        %v190 = vld [vmem:[%s154 + $0xc8] sm:$0xff]
        %v191 = vld [vmem:[%s154 + $0xd0] sm:$0xff]
        %v192 = vld [vmem:[%s154 + $0xd8] sm:$0xff]
        %v193 = vld [vmem:[%s154 + $0xe0] sm:$0xff]
        %v194 = vld [vmem:[%s154 + $0xe8] sm:$0xff]
        %v195 = vld [vmem:[%s154 + $0xf0] sm:$0xff]
        %v196 = vld [vmem:[%s154 + $0xf8] sm:$0xff]
        %v197 = vld [vmem:[%s154 + $0x100] sm:$0xff]
        %v198 = vld [vmem:[%s154 + $0x108] sm:$0xff]
        %v199 = vld [vmem:[%s154 + $0x110] sm:$0xff]
        %v200 = vld [vmem:[%s154 + $0x118] sm:$0xff]
        %v201 = vld [vmem:[%s154 + $0x120] sm:$0xff]
        %v202 = vld [vmem:[%s154 + $0x128] sm:$0xff]
        %v203 = vld [vmem:[%s154 + $0x130] sm:$0xff]
        %v204 = vld [vmem:[%s154 + $0x138] sm:$0xff]
        %v205 = vld [vmem:[%s154 + $0x140] sm:$0xff]
        %v206 = vld [vmem:[%s154 + $0x148] sm:$0xff]
        %v207 = vld [vmem:[%s154 + $0x150] sm:$0xff]
        %v208 = vld [vmem:[%s154 + $0x158] sm:$0xff]
        %v209 = vld [vmem:[%s154 + $0x160] sm:$0xff]
        %v210 = vld [vmem:[%s154 + $0x168] sm:$0xff]
        %v211 = vld [vmem:[%s154 + $0x170] sm:$0xff]
        %v212 = vld [vmem:[%s154 + $0x178] sm:$0xff]
        %v213 = vld [vmem:[%s154 + $0x180] sm:$0xff]
        %v214 = vld [vmem:[%s154 + $0x188] sm:$0xff]
        %v215 = vld [vmem:[%s154 + $0x190] sm:$0xff]
        %v216 = vld [vmem:[%s154 + $0x198] sm:$0xff]
        %v217 = vld [vmem:[%s154 + $0x1a0] sm:$0xff]
        %v218 = vld [vmem:[%s154 + $0x1a8] sm:$0xff]
        %v219 = vld [vmem:[%s154 + $0x1b0] sm:$0xff]
        %v220 = vld [vmem:[%s154 + $0x1b8] sm:$0xff]
        %v221 = vld [vmem:[%s154 + $0x1c0] sm:$0xff]
        %v222 = vld [vmem:[%s154 + $0x1c8] sm:$0xff]
        %v223 = vld [vmem:[%s154 + $0x1d0] sm:$0xff]
        %v224 = vld [vmem:[%s154 + $0x1d8] sm:$0xff]
        %v225 = vld [vmem:[%s154 + $0x1e0] sm:$0xff]
        %v226 = vld [vmem:[%s154 + $0x1e8] sm:$0xff]
        %v227 = vld [vmem:[%s154 + $0x1f0] sm:$0xff]
        %v228 = vld [vmem:[%s154 + $0x1f8] sm:$0xff]
        %v229 = vld [vmem:[%s1] sm:$0x1]
        %231 = vset.pattern.permute.xlu0 0
        %232 = vperm.xlu0 %231, %v165
        %v233 = vpop.permute.xlu0 %232
        %236 = vset.pattern.permute.xlu0 0
        %237 = vperm.xlu0 %236, %v166
        %v238 = vpop.permute.xlu0 %237
        %241 = vset.pattern.permute.xlu0 0
        %242 = vperm.xlu0 %241, %v167
        %v243 = vpop.permute.xlu0 %242
        %246 = vset.pattern.permute.xlu0 0
        %247 = vperm.xlu0 %246, %v168
        %v248 = vpop.permute.xlu0 %247
        %251 = vset.pattern.permute.xlu0 0
        %252 = vperm.xlu0 %251, %v169
        %v253 = vpop.permute.xlu0 %252
        %256 = vset.pattern.permute.xlu0 0
        %257 = vperm.xlu0 %256, %v170
        %v258 = vpop.permute.xlu0 %257
        %261 = vset.pattern.permute.xlu0 0
        %262 = vperm.xlu0 %261, %v171
        %v263 = vpop.permute.xlu0 %262
        %266 = vset.pattern.permute.xlu0 0
        %267 = vperm.xlu0 %266, %v172
        %v268 = vpop.permute.xlu0 %267
        %271 = vset.pattern.permute.xlu0 0
        %272 = vperm.xlu0 %271, %v173
        %v273 = vpop.permute.xlu0 %272
        %276 = vset.pattern.permute.xlu0 0
        %277 = vperm.xlu0 %276, %v174
        %v278 = vpop.permute.xlu0 %277
        %281 = vset.pattern.permute.xlu0 0
        %282 = vperm.xlu0 %281, %v175
        %v283 = vpop.permute.xlu0 %282
        %286 = vset.pattern.permute.xlu0 0
        %287 = vperm.xlu0 %286, %v176
        %v288 = vpop.permute.xlu0 %287
        %291 = vset.pattern.permute.xlu0 0
        %292 = vperm.xlu0 %291, %v177
        %v293 = vpop.permute.xlu0 %292
        %296 = vset.pattern.permute.xlu0 0
        %297 = vperm.xlu0 %296, %v178
        %v298 = vpop.permute.xlu0 %297
        %301 = vset.pattern.permute.xlu0 0
        %302 = vperm.xlu0 %301, %v179
        %v303 = vpop.permute.xlu0 %302
        %306 = vset.pattern.permute.xlu0 0
        %307 = vperm.xlu0 %306, %v180
        %v308 = vpop.permute.xlu0 %307
        %311 = vset.pattern.permute.xlu0 0
        %312 = vperm.xlu0 %311, %v181
        %v313 = vpop.permute.xlu0 %312
        %316 = vset.pattern.permute.xlu0 0
        %317 = vperm.xlu0 %316, %v182
        %v318 = vpop.permute.xlu0 %317
        %321 = vset.pattern.permute.xlu0 0
        %322 = vperm.xlu0 %321, %v183
        %v323 = vpop.permute.xlu0 %322
        %326 = vset.pattern.permute.xlu0 0
        %327 = vperm.xlu0 %326, %v184
        %v328 = vpop.permute.xlu0 %327
        %331 = vset.pattern.permute.xlu0 0
        %332 = vperm.xlu0 %331, %v185
        %v333 = vpop.permute.xlu0 %332
        %336 = vset.pattern.permute.xlu0 0
        %337 = vperm.xlu0 %336, %v186
        %v338 = vpop.permute.xlu0 %337
        %341 = vset.pattern.permute.xlu0 0
        %342 = vperm.xlu0 %341, %v187
        %v343 = vpop.permute.xlu0 %342
        %346 = vset.pattern.permute.xlu0 0
        %347 = vperm.xlu0 %346, %v188
        %v348 = vpop.permute.xlu0 %347
        %351 = vset.pattern.permute.xlu0 0
        %352 = vperm.xlu0 %351, %v189
        %v353 = vpop.permute.xlu0 %352
        %356 = vset.pattern.permute.xlu0 0
        %357 = vperm.xlu0 %356, %v190
        %v358 = vpop.permute.xlu0 %357
        %361 = vset.pattern.permute.xlu0 0
        %362 = vperm.xlu0 %361, %v191
        %v363 = vpop.permute.xlu0 %362
        %366 = vset.pattern.permute.xlu0 0
        %367 = vperm.xlu0 %366, %v192
        %v368 = vpop.permute.xlu0 %367
        %371 = vset.pattern.permute.xlu0 0
        %372 = vperm.xlu0 %371, %v193
        %v373 = vpop.permute.xlu0 %372
        %376 = vset.pattern.permute.xlu0 0
        %377 = vperm.xlu0 %376, %v194
        %v378 = vpop.permute.xlu0 %377
        %381 = vset.pattern.permute.xlu0 0
        %382 = vperm.xlu0 %381, %v195
        %v383 = vpop.permute.xlu0 %382
        %386 = vset.pattern.permute.xlu0 0
        %387 = vperm.xlu0 %386, %v196
        %v388 = vpop.permute.xlu0 %387
        %391 = vset.pattern.permute.xlu0 0
        %392 = vperm.xlu0 %391, %v197
        %v393 = vpop.permute.xlu0 %392
        %396 = vset.pattern.permute.xlu0 0
        %397 = vperm.xlu0 %396, %v198
        %v398 = vpop.permute.xlu0 %397
        %401 = vset.pattern.permute.xlu0 0
        %402 = vperm.xlu0 %401, %v199
        %v403 = vpop.permute.xlu0 %402
        %406 = vset.pattern.permute.xlu0 0
        %407 = vperm.xlu0 %406, %v200
        %v408 = vpop.permute.xlu0 %407
        %411 = vset.pattern.permute.xlu0 0
        %412 = vperm.xlu0 %411, %v201
        %v413 = vpop.permute.xlu0 %412
        %416 = vset.pattern.permute.xlu0 0
        %417 = vperm.xlu0 %416, %v202
        %v418 = vpop.permute.xlu0 %417
        %421 = vset.pattern.permute.xlu0 0
        %422 = vperm.xlu0 %421, %v203
        %v423 = vpop.permute.xlu0 %422
        %426 = vset.pattern.permute.xlu0 0
        %427 = vperm.xlu0 %426, %v204
        %v428 = vpop.permute.xlu0 %427
        %431 = vset.pattern.permute.xlu0 0
        %432 = vperm.xlu0 %431, %v205
        %v433 = vpop.permute.xlu0 %432
        %436 = vset.pattern.permute.xlu0 0
        %437 = vperm.xlu0 %436, %v206
        %v438 = vpop.permute.xlu0 %437
        %441 = vset.pattern.permute.xlu0 0
        %442 = vperm.xlu0 %441, %v207
        %v443 = vpop.permute.xlu0 %442
        %446 = vset.pattern.permute.xlu0 0
        %447 = vperm.xlu0 %446, %v208
        %v448 = vpop.permute.xlu0 %447
        %451 = vset.pattern.permute.xlu0 0
        %452 = vperm.xlu0 %451, %v209
        %v453 = vpop.permute.xlu0 %452
        %456 = vset.pattern.permute.xlu0 0
        %457 = vperm.xlu0 %456, %v210
        %v458 = vpop.permute.xlu0 %457
        %461 = vset.pattern.permute.xlu0 0
        %462 = vperm.xlu0 %461, %v211
        %v463 = vpop.permute.xlu0 %462
        %466 = vset.pattern.permute.xlu0 0
        %467 = vperm.xlu0 %466, %v212
        %v468 = vpop.permute.xlu0 %467
        %471 = vset.pattern.permute.xlu0 0
        %472 = vperm.xlu0 %471, %v213
        %v473 = vpop.permute.xlu0 %472
        %476 = vset.pattern.permute.xlu0 0
        %477 = vperm.xlu0 %476, %v214
        %v478 = vpop.permute.xlu0 %477
        %481 = vset.pattern.permute.xlu0 0
        %482 = vperm.xlu0 %481, %v215
        %v483 = vpop.permute.xlu0 %482
        %486 = vset.pattern.permute.xlu0 0
        %487 = vperm.xlu0 %486, %v216
        %v488 = vpop.permute.xlu0 %487
        %491 = vset.pattern.permute.xlu0 0
        %492 = vperm.xlu0 %491, %v217
        %v493 = vpop.permute.xlu0 %492
        %496 = vset.pattern.permute.xlu0 0
        %497 = vperm.xlu0 %496, %v218
        %v498 = vpop.permute.xlu0 %497
        %501 = vset.pattern.permute.xlu0 0
        %502 = vperm.xlu0 %501, %v219
        %v503 = vpop.permute.xlu0 %502
        %506 = vset.pattern.permute.xlu0 0
        %507 = vperm.xlu0 %506, %v220
        %v508 = vpop.permute.xlu0 %507
        %511 = vset.pattern.permute.xlu0 0
        %512 = vperm.xlu0 %511, %v221
        %v513 = vpop.permute.xlu0 %512
        %516 = vset.pattern.permute.xlu0 0
        %517 = vperm.xlu0 %516, %v222
        %v518 = vpop.permute.xlu0 %517
        %521 = vset.pattern.permute.xlu0 0
        %522 = vperm.xlu0 %521, %v223
        %v523 = vpop.permute.xlu0 %522
        %526 = vset.pattern.permute.xlu0 0
        %527 = vperm.xlu0 %526, %v224
        %v528 = vpop.permute.xlu0 %527
        %531 = vset.pattern.permute.xlu0 0
        %532 = vperm.xlu0 %531, %v225
        %v533 = vpop.permute.xlu0 %532
        %536 = vset.pattern.permute.xlu0 0
        %537 = vperm.xlu0 %536, %v226
        %v538 = vpop.permute.xlu0 %537
        %541 = vset.pattern.permute.xlu0 0
        %542 = vperm.xlu0 %541, %v227
        %v543 = vpop.permute.xlu0 %542
        %546 = vset.pattern.permute.xlu0 0
        %547 = vperm.xlu0 %546, %v228
        %v548 = vpop.permute.xlu0 %547
        %v551 = vlaneseq
        %v552 = vshrl.u32 %v551, 7
        %v553 = vsub.s32 0, %v552
        %v554 = vrot.slane %v229, %v553
        %v556 = vsub.f32 %v233, %v554
        %v557 = vsub.f32 %v238, %v554
        %v558 = vsub.f32 %v243, %v554
        %v559 = vsub.f32 %v248, %v554
        %v560 = vsub.f32 %v253, %v554
        %v561 = vsub.f32 %v258, %v554
        %v562 = vsub.f32 %v263, %v554
        %v563 = vsub.f32 %v268, %v554
        %v564 = vsub.f32 %v273, %v554
        %v565 = vsub.f32 %v278, %v554
        %v566 = vsub.f32 %v283, %v554
        %v567 = vsub.f32 %v288, %v554
        %v568 = vsub.f32 %v293, %v554
        %v569 = vsub.f32 %v298, %v554
        %v570 = vsub.f32 %v303, %v554
        %v571 = vsub.f32 %v308, %v554
        %v572 = vsub.f32 %v313, %v554
        %v573 = vsub.f32 %v318, %v554
        %v574 = vsub.f32 %v323, %v554
        %v575 = vsub.f32 %v328, %v554
        %v576 = vsub.f32 %v333, %v554
        %v577 = vsub.f32 %v338, %v554
        %v578 = vsub.f32 %v343, %v554
        %v579 = vsub.f32 %v348, %v554
        %v580 = vsub.f32 %v353, %v554
        %v581 = vsub.f32 %v358, %v554
        %v582 = vsub.f32 %v363, %v554
        %v583 = vsub.f32 %v368, %v554
        %v584 = vsub.f32 %v373, %v554
        %v585 = vsub.f32 %v378, %v554
        %v586 = vsub.f32 %v383, %v554
        %v587 = vsub.f32 %v388, %v554
        %v588 = vsub.f32 %v393, %v554
        %v589 = vsub.f32 %v398, %v554
        %v590 = vsub.f32 %v403, %v554
        %v591 = vsub.f32 %v408, %v554
        %v592 = vsub.f32 %v413, %v554
        %v593 = vsub.f32 %v418, %v554
        %v594 = vsub.f32 %v423, %v554
        %v595 = vsub.f32 %v428, %v554
        %v596 = vsub.f32 %v433, %v554
        %v597 = vsub.f32 %v438, %v554
        %v598 = vsub.f32 %v443, %v554
        %v599 = vsub.f32 %v448, %v554
        %v600 = vsub.f32 %v453, %v554
        %v601 = vsub.f32 %v458, %v554
        %v602 = vsub.f32 %v463, %v554
        %v603 = vsub.f32 %v468, %v554
        %v604 = vsub.f32 %v473, %v554
        %v605 = vsub.f32 %v478, %v554
        %v606 = vsub.f32 %v483, %v554
        %v607 = vsub.f32 %v488, %v554
        %v608 = vsub.f32 %v493, %v554
        %v609 = vsub.f32 %v498, %v554
        %v610 = vsub.f32 %v503, %v554
        %v611 = vsub.f32 %v508, %v554
        %v612 = vsub.f32 %v513, %v554
        %v613 = vsub.f32 %v518, %v554
        %v614 = vsub.f32 %v523, %v554
        %v615 = vsub.f32 %v528, %v554
        %v616 = vsub.f32 %v533, %v554
        %v617 = vsub.f32 %v538, %v554
        %v618 = vsub.f32 %v543, %v554
        %v619 = vsub.f32 %v548, %v554
        %v620 = vmul.f32 %v556, %v556
        %v621 = vmul.f32 %v557, %v557
        %v622 = vmul.f32 %v558, %v558
        %v623 = vmul.f32 %v559, %v559
        %v624 = vmul.f32 %v560, %v560
        %v625 = vmul.f32 %v561, %v561
        %v626 = vmul.f32 %v562, %v562
        %v627 = vmul.f32 %v563, %v563
        %v628 = vmul.f32 %v564, %v564
        %v629 = vmul.f32 %v565, %v565
        %v630 = vmul.f32 %v566, %v566
        %v631 = vmul.f32 %v567, %v567
        %v632 = vmul.f32 %v568, %v568
        %v633 = vmul.f32 %v569, %v569
        %v634 = vmul.f32 %v570, %v570
        %v635 = vmul.f32 %v571, %v571
        %v636 = vmul.f32 %v572, %v572
        %v637 = vmul.f32 %v573, %v573
        %v638 = vmul.f32 %v574, %v574
        %v639 = vmul.f32 %v575, %v575
        %v640 = vmul.f32 %v576, %v576
        %v641 = vmul.f32 %v577, %v577
        %v642 = vmul.f32 %v578, %v578
        %v643 = vmul.f32 %v579, %v579
        %v644 = vmul.f32 %v580, %v580
        %v645 = vmul.f32 %v581, %v581
        %v646 = vmul.f32 %v582, %v582
        %v647 = vmul.f32 %v583, %v583
        %v648 = vmul.f32 %v584, %v584
        %v649 = vmul.f32 %v585, %v585
        %v650 = vmul.f32 %v586, %v586
        %v651 = vmul.f32 %v587, %v587
        %v652 = vmul.f32 %v588, %v588
        %v653 = vmul.f32 %v589, %v589
        %v654 = vmul.f32 %v590, %v590
        %v655 = vmul.f32 %v591, %v591
        %v656 = vmul.f32 %v592, %v592
        %v657 = vmul.f32 %v593, %v593
        %v658 = vmul.f32 %v594, %v594
        %v659 = vmul.f32 %v595, %v595
        %v660 = vmul.f32 %v596, %v596
        %v661 = vmul.f32 %v597, %v597
        %v662 = vmul.f32 %v598, %v598
        %v663 = vmul.f32 %v599, %v599
        %v664 = vmul.f32 %v600, %v600
        %v665 = vmul.f32 %v601, %v601
        %v666 = vmul.f32 %v602, %v602
        %v667 = vmul.f32 %v603, %v603
        %v668 = vmul.f32 %v604, %v604
        %v669 = vmul.f32 %v605, %v605
        %v670 = vmul.f32 %v606, %v606
        %v671 = vmul.f32 %v607, %v607
        %v672 = vmul.f32 %v608, %v608
        %v673 = vmul.f32 %v609, %v609
        %v674 = vmul.f32 %v610, %v610
        %v675 = vmul.f32 %v611, %v611
        %v676 = vmul.f32 %v612, %v612
        %v677 = vmul.f32 %v613, %v613
        %v678 = vmul.f32 %v614, %v614
        %v679 = vmul.f32 %v615, %v615
        %v680 = vmul.f32 %v616, %v616
        %v681 = vmul.f32 %v617, %v617
        %v682 = vmul.f32 %v618, %v618
        %v683 = vmul.f32 %v619, %v619
        %v684 = vmul.f32 %v620, -69.27821
        %v685 = vmul.f32 %v621, -69.27821
        %v686 = vmul.f32 %v622, -69.27821
        %v687 = vmul.f32 %v623, -69.27821
        %v688 = vmul.f32 %v624, -69.27821
        %v689 = vmul.f32 %v625, -69.27821
        %v690 = vmul.f32 %v626, -69.27821
        %v691 = vmul.f32 %v627, -69.27821
        %v692 = vmul.f32 %v628, -69.27821
        %v693 = vmul.f32 %v629, -69.27821
        %v694 = vmul.f32 %v630, -69.27821
        %v695 = vmul.f32 %v631, -69.27821
        %v696 = vmul.f32 %v632, -69.27821
        %v697 = vmul.f32 %v633, -69.27821
        %v698 = vmul.f32 %v634, -69.27821
        %v699 = vmul.f32 %v635, -69.27821
        %v700 = vmul.f32 %v636, -69.27821
        %v701 = vmul.f32 %v637, -69.27821
        %v702 = vmul.f32 %v638, -69.27821
        %v703 = vmul.f32 %v639, -69.27821
        %v704 = vmul.f32 %v640, -69.27821
        %v705 = vmul.f32 %v641, -69.27821
        %v706 = vmul.f32 %v642, -69.27821
        %v707 = vmul.f32 %v643, -69.27821
        %v708 = vmul.f32 %v644, -69.27821
        %v709 = vmul.f32 %v645, -69.27821
        %v710 = vmul.f32 %v646, -69.27821
        %v711 = vmul.f32 %v647, -69.27821
        %v712 = vmul.f32 %v648, -69.27821
        %v713 = vmul.f32 %v649, -69.27821
        %v714 = vmul.f32 %v650, -69.27821
        %v715 = vmul.f32 %v651, -69.27821
        %v716 = vmul.f32 %v652, -69.27821
        %v717 = vmul.f32 %v653, -69.27821
        %v718 = vmul.f32 %v654, -69.27821
        %v719 = vmul.f32 %v655, -69.27821
        %v720 = vmul.f32 %v656, -69.27821
        %v721 = vmul.f32 %v657, -69.27821
        %v722 = vmul.f32 %v658, -69.27821
        %v723 = vmul.f32 %v659, -69.27821
        %v724 = vmul.f32 %v660, -69.27821
        %v725 = vmul.f32 %v661, -69.27821
        %v726 = vmul.f32 %v662, -69.27821
        %v727 = vmul.f32 %v663, -69.27821
        %v728 = vmul.f32 %v664, -69.27821
        %v729 = vmul.f32 %v665, -69.27821
        %v730 = vmul.f32 %v666, -69.27821
        %v731 = vmul.f32 %v667, -69.27821
        %v732 = vmul.f32 %v668, -69.27821
        %v733 = vmul.f32 %v669, -69.27821
        %v734 = vmul.f32 %v670, -69.27821
        %v735 = vmul.f32 %v671, -69.27821
        %v736 = vmul.f32 %v672, -69.27821
        %v737 = vmul.f32 %v673, -69.27821
        %v738 = vmul.f32 %v674, -69.27821
        %v739 = vmul.f32 %v675, -69.27821
        %v740 = vmul.f32 %v676, -69.27821
        %v741 = vmul.f32 %v677, -69.27821
        %v742 = vmul.f32 %v678, -69.27821
        %v743 = vmul.f32 %v679, -69.27821
        %v744 = vmul.f32 %v680, -69.27821
        %v745 = vmul.f32 %v681, -69.27821
        %v746 = vmul.f32 %v682, -69.27821
        %v747 = vmul.f32 %v683, -69.27821
        %v748 = vpow.pop %v684
        %v749 = vpow.pop %v685
        %v750 = vpow.pop %v686
        %v751 = vpow.pop %v687
        %v752 = vpow.pop %v688
        %v753 = vpow.pop %v689
        %v754 = vpow.pop %v690
        %v755 = vpow.pop %v691
        %v756 = vpow.pop %v692
        %v757 = vpow.pop %v693
        %v758 = vpow.pop %v694
        %v759 = vpow.pop %v695
        %v760 = vpow.pop %v696
        %v761 = vpow.pop %v697
        %v762 = vpow.pop %v698
        %v763 = vpow.pop %v699
        %v764 = vpow.pop %v700
        %v765 = vpow.pop %v701
        %v766 = vpow.pop %v702
        %v767 = vpow.pop %v703
        %v768 = vpow.pop %v704
        %v769 = vpow.pop %v705
        %v770 = vpow.pop %v706
        %v771 = vpow.pop %v707
        %v772 = vpow.pop %v708
        %v773 = vpow.pop %v709
        %v774 = vpow.pop %v710
        %v775 = vpow.pop %v711
        %v776 = vpow.pop %v712
        %v777 = vpow.pop %v713
        %v778 = vpow.pop %v714
        %v779 = vpow.pop %v715
        %v780 = vpow.pop %v716
        %v781 = vpow.pop %v717
        %v782 = vpow.pop %v718
        %v783 = vpow.pop %v719
        %v784 = vpow.pop %v720
        %v785 = vpow.pop %v721
        %v786 = vpow.pop %v722
        %v787 = vpow.pop %v723
        %v788 = vpow.pop %v724
        %v789 = vpow.pop %v725
        %v790 = vpow.pop %v726
        %v791 = vpow.pop %v727
        %v792 = vpow.pop %v728
        %v793 = vpow.pop %v729
        %v794 = vpow.pop %v730
        %v795 = vpow.pop %v731
        %v796 = vpow.pop %v732
        %v797 = vpow.pop %v733
        %v798 = vpow.pop %v734
        %v799 = vpow.pop %v735
        %v800 = vpow.pop %v736
        %v801 = vpow.pop %v737
        %v802 = vpow.pop %v738
        %v803 = vpow.pop %v739
        %v804 = vpow.pop %v740
        %v805 = vpow.pop %v741
        %v806 = vpow.pop %v742
        %v807 = vpow.pop %v743
        %v808 = vpow.pop %v744
        %v809 = vpow.pop %v745
        %v810 = vpow.pop %v746
        %v811 = vpow.pop %v747
        %vm812 = vcmask 408576
        %813 = vst.msk [vmem:[%s145] sm:$0xff] %vm812, %v748
        %814 = vst.msk [vmem:[%s145 + $0x8] sm:$0xff] %vm812, %v749
        %815 = vst.msk [vmem:[%s145 + $0x10] sm:$0xff] %vm812, %v750
        %816 = vst.msk [vmem:[%s145 + $0x18] sm:$0xff] %vm812, %v751
        %817 = vst.msk [vmem:[%s145 + $0x20] sm:$0xff] %vm812, %v752
        %818 = vst.msk [vmem:[%s145 + $0x28] sm:$0xff] %vm812, %v753
        %819 = vst.msk [vmem:[%s145 + $0x30] sm:$0xff] %vm812, %v754
        %820 = vst.msk [vmem:[%s145 + $0x38] sm:$0xff] %vm812, %v755
        %821 = vst.msk [vmem:[%s145 + $0x40] sm:$0xff] %vm812, %v756
        %822 = vst.msk [vmem:[%s145 + $0x48] sm:$0xff] %vm812, %v757
        %823 = vst.msk [vmem:[%s145 + $0x50] sm:$0xff] %vm812, %v758
        %824 = vst.msk [vmem:[%s145 + $0x58] sm:$0xff] %vm812, %v759
        %825 = vst.msk [vmem:[%s145 + $0x60] sm:$0xff] %vm812, %v760
        %826 = vst.msk [vmem:[%s145 + $0x68] sm:$0xff] %vm812, %v761
        %827 = vst.msk [vmem:[%s145 + $0x70] sm:$0xff] %vm812, %v762
        %828 = vst.msk [vmem:[%s145 + $0x78] sm:$0xff] %vm812, %v763
        %829 = vst.msk [vmem:[%s145 + $0x80] sm:$0xff] %vm812, %v764
        %830 = vst.msk [vmem:[%s145 + $0x88] sm:$0xff] %vm812, %v765
        %831 = vst.msk [vmem:[%s145 + $0x90] sm:$0xff] %vm812, %v766
        %832 = vst.msk [vmem:[%s145 + $0x98] sm:$0xff] %vm812, %v767
        %833 = vst.msk [vmem:[%s145 + $0xa0] sm:$0xff] %vm812, %v768
        %834 = vst.msk [vmem:[%s145 + $0xa8] sm:$0xff] %vm812, %v769
        %835 = vst.msk [vmem:[%s145 + $0xb0] sm:$0xff] %vm812, %v770
        %836 = vst.msk [vmem:[%s145 + $0xb8] sm:$0xff] %vm812, %v771
        %837 = vst.msk [vmem:[%s145 + $0xc0] sm:$0xff] %vm812, %v772
        %838 = vst.msk [vmem:[%s145 + $0xc8] sm:$0xff] %vm812, %v773
        %839 = vst.msk [vmem:[%s145 + $0xd0] sm:$0xff] %vm812, %v774
        %840 = vst.msk [vmem:[%s145 + $0xd8] sm:$0xff] %vm812, %v775
        %841 = vst.msk [vmem:[%s145 + $0xe0] sm:$0xff] %vm812, %v776
        %842 = vst.msk [vmem:[%s145 + $0xe8] sm:$0xff] %vm812, %v777
        %843 = vst.msk [vmem:[%s145 + $0xf0] sm:$0xff] %vm812, %v778
        %844 = vst.msk [vmem:[%s145 + $0xf8] sm:$0xff] %vm812, %v779
        %845 = vst.msk [vmem:[%s145 + $0x100] sm:$0xff] %vm812, %v780
        %846 = vst.msk [vmem:[%s145 + $0x108] sm:$0xff] %vm812, %v781
        %847 = vst.msk [vmem:[%s145 + $0x110] sm:$0xff] %vm812, %v782
        %848 = vst.msk [vmem:[%s145 + $0x118] sm:$0xff] %vm812, %v783
        %849 = vst.msk [vmem:[%s145 + $0x120] sm:$0xff] %vm812, %v784
        %850 = vst.msk [vmem:[%s145 + $0x128] sm:$0xff] %vm812, %v785
        %851 = vst.msk [vmem:[%s145 + $0x130] sm:$0xff] %vm812, %v786
        %852 = vst.msk [vmem:[%s145 + $0x138] sm:$0xff] %vm812, %v787
        %853 = vst.msk [vmem:[%s145 + $0x140] sm:$0xff] %vm812, %v788
        %854 = vst.msk [vmem:[%s145 + $0x148] sm:$0xff] %vm812, %v789
        %855 = vst.msk [vmem:[%s145 + $0x150] sm:$0xff] %vm812, %v790
        %856 = vst.msk [vmem:[%s145 + $0x158] sm:$0xff] %vm812, %v791
        %857 = vst.msk [vmem:[%s145 + $0x160] sm:$0xff] %vm812, %v792
        %858 = vst.msk [vmem:[%s145 + $0x168] sm:$0xff] %vm812, %v793
        %859 = vst.msk [vmem:[%s145 + $0x170] sm:$0xff] %vm812, %v794
        %860 = vst.msk [vmem:[%s145 + $0x178] sm:$0xff] %vm812, %v795
        %861 = vst.msk [vmem:[%s145 + $0x180] sm:$0xff] %vm812, %v796
        %862 = vst.msk [vmem:[%s145 + $0x188] sm:$0xff] %vm812, %v797
        %863 = vst.msk [vmem:[%s145 + $0x190] sm:$0xff] %vm812, %v798
        %864 = vst.msk [vmem:[%s145 + $0x198] sm:$0xff] %vm812, %v799
        %865 = vst.msk [vmem:[%s145 + $0x1a0] sm:$0xff] %vm812, %v800
        %866 = vst.msk [vmem:[%s145 + $0x1a8] sm:$0xff] %vm812, %v801
        %867 = vst.msk [vmem:[%s145 + $0x1b0] sm:$0xff] %vm812, %v802
        %868 = vst.msk [vmem:[%s145 + $0x1b8] sm:$0xff] %vm812, %v803
        %869 = vst.msk [vmem:[%s145 + $0x1c0] sm:$0xff] %vm812, %v804
        %870 = vst.msk [vmem:[%s145 + $0x1c8] sm:$0xff] %vm812, %v805
        %871 = vst.msk [vmem:[%s145 + $0x1d0] sm:$0xff] %vm812, %v806
        %872 = vst.msk [vmem:[%s145 + $0x1d8] sm:$0xff] %vm812, %v807
        %873 = vst.msk [vmem:[%s145 + $0x1e0] sm:$0xff] %vm812, %v808
        %874 = vst.msk [vmem:[%s145 + $0x1e8] sm:$0xff] %vm812, %v809
        %875 = vst.msk [vmem:[%s145 + $0x1f0] sm:$0xff] %vm812, %v810
        %876 = vst.msk [vmem:[%s145 + $0x1f8] sm:$0xff] %vm812, %v811
        %s877 = sand.u32 %s68, 1
        %s878 = sand.u32 %s68, 1
        %s879 = smul.addr %s878, 512
        %s880 = scalar_lea.vmem [#allocation2], %s879
        // Predicated region
        $region29: #{tpu_custom_call.1} parent=27 // pred_check
          %p881 = pneg %p78
        $region30: #{tpu_custom_call.1} parent=27 // pred_check_branch
          %883 = sbr.rel (%p881) target = $region32
        $region31: #{tpu_custom_call.1} parent=27 // pred_region
          %s884 = smul.u32 64, %s13
          %s885 = ssub.s32 126, %s884
          %p886 = scmp.lt.s32.totalorder %s885, 64
          %s887 = scalar_select %p886, %s885, 64
          %s888 = smul.u32 128, %s887
          %p889 = scmp.ne.s32.totalorder 0, %s888
          %s890 = smul.addr %s884, 8
          %s891 = scalar_lea.vmem %s2, %s890
          // Predicated region
          $region33: #{tpu_custom_call.1} parent=31 // pred_check
            %p892 = pneg %p889
          $region34: #{tpu_custom_call.1} parent=31 // pred_check_branch
            %894 = sbr.rel (%p892) target = $region36
          $region35: #{tpu_custom_call.1} parent=31 // pred_region
            // Predicated region
            $region37: #{tpu_custom_call.1} parent=35 // pred_check
              _
            $region38: #{tpu_custom_call.1} parent=35 // pred_check_branch
              %896 = sbr.rel (0) target = $region40
            $region39: #{tpu_custom_call.1} parent=35 // pred_region
              // Predicated region
              $region59: #{tpu_custom_call.1} parent=39 // pred_check
                _
              $region60: #{tpu_custom_call.1} parent=39 // pred_check_branch
                %1071 = sbr.rel (0) target = $region62
              $region61: #{tpu_custom_call.1} parent=39 // pred_region
                %s1072 = sshrl.u32 %s887, 6
                // While loop
                $region63: #{tpu_custom_call.1} parent=61 // loop_pre_header
                  _
                $region64: #{tpu_custom_call.1} parent=61 // loop_header
                  %s1074 = sphi 0, %s1076
                  %p1075 = scmp.ge.s32.totalorder %s1074, %s1072
                  %s1079 = sphi 0, %s1212
                  %s1080 = sphi %s880, %s1215
                  %s1081 = sphi %s891, %s1216
                $region65: #{tpu_custom_call.1} parent=61 // loop_header_branch
                  %1078 = sbr.rel (%p1075) target = $region69
                $region66: #{tpu_custom_call.1} parent=61 // loop_body
                  %v1082 = vld [vmem:[%s1080] sm:$0xff]
                  %1083 = vst [vmem:[%s1081] sm:$0xff] %v1082
                  %v1084 = vld [vmem:[%s1080 + $0x8] sm:$0xff]
                  %1085 = vst [vmem:[%s1081 + $0x8] sm:$0xff] %v1084
                  %v1086 = vld [vmem:[%s1080 + $0x10] sm:$0xff]
                  %1087 = vst [vmem:[%s1081 + $0x10] sm:$0xff] %v1086
                  %v1088 = vld [vmem:[%s1080 + $0x18] sm:$0xff]
                  %1089 = vst [vmem:[%s1081 + $0x18] sm:$0xff] %v1088
                  %v1090 = vld [vmem:[%s1080 + $0x20] sm:$0xff]
                  %1091 = vst [vmem:[%s1081 + $0x20] sm:$0xff] %v1090
                  %v1092 = vld [vmem:[%s1080 + $0x28] sm:$0xff]
                  %1093 = vst [vmem:[%s1081 + $0x28] sm:$0xff] %v1092
                  %v1094 = vld [vmem:[%s1080 + $0x30] sm:$0xff]
                  %1095 = vst [vmem:[%s1081 + $0x30] sm:$0xff] %v1094
                  %v1096 = vld [vmem:[%s1080 + $0x38] sm:$0xff]
                  %1097 = vst [vmem:[%s1081 + $0x38] sm:$0xff] %v1096
                  %v1098 = vld [vmem:[%s1080 + $0x40] sm:$0xff]
                  %1099 = vst [vmem:[%s1081 + $0x40] sm:$0xff] %v1098
                  %v1100 = vld [vmem:[%s1080 + $0x48] sm:$0xff]
                  %1101 = vst [vmem:[%s1081 + $0x48] sm:$0xff] %v1100
                  %v1102 = vld [vmem:[%s1080 + $0x50] sm:$0xff]
                  %1103 = vst [vmem:[%s1081 + $0x50] sm:$0xff] %v1102
                  %v1104 = vld [vmem:[%s1080 + $0x58] sm:$0xff]
                  %1105 = vst [vmem:[%s1081 + $0x58] sm:$0xff] %v1104
                  %v1106 = vld [vmem:[%s1080 + $0x60] sm:$0xff]
                  %1107 = vst [vmem:[%s1081 + $0x60] sm:$0xff] %v1106
                  %v1108 = vld [vmem:[%s1080 + $0x68] sm:$0xff]
                  %1109 = vst [vmem:[%s1081 + $0x68] sm:$0xff] %v1108
                  %v1110 = vld [vmem:[%s1080 + $0x70] sm:$0xff]
                  %1111 = vst [vmem:[%s1081 + $0x70] sm:$0xff] %v1110
                  %v1112 = vld [vmem:[%s1080 + $0x78] sm:$0xff]
                  %1113 = vst [vmem:[%s1081 + $0x78] sm:$0xff] %v1112
                  %v1114 = vld [vmem:[%s1080 + $0x80] sm:$0xff]
                  %1115 = vst [vmem:[%s1081 + $0x80] sm:$0xff] %v1114
                  %v1116 = vld [vmem:[%s1080 + $0x88] sm:$0xff]
                  %1117 = vst [vmem:[%s1081 + $0x88] sm:$0xff] %v1116
                  %v1118 = vld [vmem:[%s1080 + $0x90] sm:$0xff]
                  %1119 = vst [vmem:[%s1081 + $0x90] sm:$0xff] %v1118
                  %v1120 = vld [vmem:[%s1080 + $0x98] sm:$0xff]
                  %1121 = vst [vmem:[%s1081 + $0x98] sm:$0xff] %v1120
                  %v1122 = vld [vmem:[%s1080 + $0xa0] sm:$0xff]
                  %1123 = vst [vmem:[%s1081 + $0xa0] sm:$0xff] %v1122
                  %v1124 = vld [vmem:[%s1080 + $0xa8] sm:$0xff]
                  %1125 = vst [vmem:[%s1081 + $0xa8] sm:$0xff] %v1124
                  %v1126 = vld [vmem:[%s1080 + $0xb0] sm:$0xff]
                  %1127 = vst [vmem:[%s1081 + $0xb0] sm:$0xff] %v1126
                  %v1128 = vld [vmem:[%s1080 + $0xb8] sm:$0xff]
                  %1129 = vst [vmem:[%s1081 + $0xb8] sm:$0xff] %v1128
                  %v1130 = vld [vmem:[%s1080 + $0xc0] sm:$0xff]
                  %1131 = vst [vmem:[%s1081 + $0xc0] sm:$0xff] %v1130
                  %v1132 = vld [vmem:[%s1080 + $0xc8] sm:$0xff]
                  %1133 = vst [vmem:[%s1081 + $0xc8] sm:$0xff] %v1132
                  %v1134 = vld [vmem:[%s1080 + $0xd0] sm:$0xff]
                  %1135 = vst [vmem:[%s1081 + $0xd0] sm:$0xff] %v1134
                  %v1136 = vld [vmem:[%s1080 + $0xd8] sm:$0xff]
                  %1137 = vst [vmem:[%s1081 + $0xd8] sm:$0xff] %v1136
                  %v1138 = vld [vmem:[%s1080 + $0xe0] sm:$0xff]
                  %1139 = vst [vmem:[%s1081 + $0xe0] sm:$0xff] %v1138
                  %v1140 = vld [vmem:[%s1080 + $0xe8] sm:$0xff]
                  %1141 = vst [vmem:[%s1081 + $0xe8] sm:$0xff] %v1140
                  %v1142 = vld [vmem:[%s1080 + $0xf0] sm:$0xff]
                  %1143 = vst [vmem:[%s1081 + $0xf0] sm:$0xff] %v1142
                  %v1144 = vld [vmem:[%s1080 + $0xf8] sm:$0xff]
                  %1145 = vst [vmem:[%s1081 + $0xf8] sm:$0xff] %v1144
                  %v1146 = vld [vmem:[%s1080 + $0x100] sm:$0xff]
                  %1147 = vst [vmem:[%s1081 + $0x100] sm:$0xff] %v1146
                  %v1148 = vld [vmem:[%s1080 + $0x108] sm:$0xff]
                  %1149 = vst [vmem:[%s1081 + $0x108] sm:$0xff] %v1148
                  %v1150 = vld [vmem:[%s1080 + $0x110] sm:$0xff]
                  %1151 = vst [vmem:[%s1081 + $0x110] sm:$0xff] %v1150
                  %v1152 = vld [vmem:[%s1080 + $0x118] sm:$0xff]
                  %1153 = vst [vmem:[%s1081 + $0x118] sm:$0xff] %v1152
                  %v1154 = vld [vmem:[%s1080 + $0x120] sm:$0xff]
                  %1155 = vst [vmem:[%s1081 + $0x120] sm:$0xff] %v1154
                  %v1156 = vld [vmem:[%s1080 + $0x128] sm:$0xff]
                  %1157 = vst [vmem:[%s1081 + $0x128] sm:$0xff] %v1156
                  %v1158 = vld [vmem:[%s1080 + $0x130] sm:$0xff]
                  %1159 = vst [vmem:[%s1081 + $0x130] sm:$0xff] %v1158
                  %v1160 = vld [vmem:[%s1080 + $0x138] sm:$0xff]
                  %1161 = vst [vmem:[%s1081 + $0x138] sm:$0xff] %v1160
                  %v1162 = vld [vmem:[%s1080 + $0x140] sm:$0xff]
                  %1163 = vst [vmem:[%s1081 + $0x140] sm:$0xff] %v1162
                  %v1164 = vld [vmem:[%s1080 + $0x148] sm:$0xff]
                  %1165 = vst [vmem:[%s1081 + $0x148] sm:$0xff] %v1164
                  %v1166 = vld [vmem:[%s1080 + $0x150] sm:$0xff]
                  %1167 = vst [vmem:[%s1081 + $0x150] sm:$0xff] %v1166
                  %v1168 = vld [vmem:[%s1080 + $0x158] sm:$0xff]
                  %1169 = vst [vmem:[%s1081 + $0x158] sm:$0xff] %v1168
                  %v1170 = vld [vmem:[%s1080 + $0x160] sm:$0xff]
                  %1171 = vst [vmem:[%s1081 + $0x160] sm:$0xff] %v1170
                  %v1172 = vld [vmem:[%s1080 + $0x168] sm:$0xff]
                  %1173 = vst [vmem:[%s1081 + $0x168] sm:$0xff] %v1172
                  %v1174 = vld [vmem:[%s1080 + $0x170] sm:$0xff]
                  %1175 = vst [vmem:[%s1081 + $0x170] sm:$0xff] %v1174
                  %v1176 = vld [vmem:[%s1080 + $0x178] sm:$0xff]
                  %1177 = vst [vmem:[%s1081 + $0x178] sm:$0xff] %v1176
                  %v1178 = vld [vmem:[%s1080 + $0x180] sm:$0xff]
                  %1179 = vst [vmem:[%s1081 + $0x180] sm:$0xff] %v1178
                  %v1180 = vld [vmem:[%s1080 + $0x188] sm:$0xff]
                  %1181 = vst [vmem:[%s1081 + $0x188] sm:$0xff] %v1180
                  %v1182 = vld [vmem:[%s1080 + $0x190] sm:$0xff]
                  %1183 = vst [vmem:[%s1081 + $0x190] sm:$0xff] %v1182
                  %v1184 = vld [vmem:[%s1080 + $0x198] sm:$0xff]
                  %1185 = vst [vmem:[%s1081 + $0x198] sm:$0xff] %v1184
                  %v1186 = vld [vmem:[%s1080 + $0x1a0] sm:$0xff]
                  %1187 = vst [vmem:[%s1081 + $0x1a0] sm:$0xff] %v1186
                  %v1188 = vld [vmem:[%s1080 + $0x1a8] sm:$0xff]
                  %1189 = vst [vmem:[%s1081 + $0x1a8] sm:$0xff] %v1188
                  %v1190 = vld [vmem:[%s1080 + $0x1b0] sm:$0xff]
                  %1191 = vst [vmem:[%s1081 + $0x1b0] sm:$0xff] %v1190
                  %v1192 = vld [vmem:[%s1080 + $0x1b8] sm:$0xff]
                  %1193 = vst [vmem:[%s1081 + $0x1b8] sm:$0xff] %v1192
                  %v1194 = vld [vmem:[%s1080 + $0x1c0] sm:$0xff]
                  %1195 = vst [vmem:[%s1081 + $0x1c0] sm:$0xff] %v1194
                  %v1196 = vld [vmem:[%s1080 + $0x1c8] sm:$0xff]
                  %1197 = vst [vmem:[%s1081 + $0x1c8] sm:$0xff] %v1196
                  %v1198 = vld [vmem:[%s1080 + $0x1d0] sm:$0xff]
                  %1199 = vst [vmem:[%s1081 + $0x1d0] sm:$0xff] %v1198
                  %v1200 = vld [vmem:[%s1080 + $0x1d8] sm:$0xff]
                  %1201 = vst [vmem:[%s1081 + $0x1d8] sm:$0xff] %v1200
                  %v1202 = vld [vmem:[%s1080 + $0x1e0] sm:$0xff]
                  %1203 = vst [vmem:[%s1081 + $0x1e0] sm:$0xff] %v1202
                  %v1204 = vld [vmem:[%s1080 + $0x1e8] sm:$0xff]
                  %1205 = vst [vmem:[%s1081 + $0x1e8] sm:$0xff] %v1204
                  %v1206 = vld [vmem:[%s1080 + $0x1f0] sm:$0xff]
                  %1207 = vst [vmem:[%s1081 + $0x1f0] sm:$0xff] %v1206
                  %v1208 = vld [vmem:[%s1080 + $0x1f8] sm:$0xff]
                  %1209 = vst [vmem:[%s1081 + $0x1f8] sm:$0xff] %v1208
                  %s1210 = sadd.s32 1, %s1079
                  %p1211 = scmp.ge.s32.totalorder %s1210, %s1072
                  %s1212 = scalar_select %p1211, 0, %s1210
                  %s1213 = smul.u32 %s1212, 512
                  %s1214 = smul.u32 %s1212, 512
                  %s1215 = scalar_lea.vmem %s880, %s1213 [#allocation2]
                  %s1216 = scalar_lea.vmem %s891, %s1214
                $region67: #{tpu_custom_call.1} parent=61 // loop_footer
                  %s1076 = sadd.s32 %s1074, 1
                $region68: #{tpu_custom_call.1} parent=61 // loop_footer_branch
                  %1073 = sbr.rel target = $region64
                $region69: #{tpu_custom_call.1} parent=61 // loop_exit
                  _
                %s1217 = sshrl.u32 %s887, 6
                %s1218 = sand.u32 %s887, 63
                %s1219 = smul.u32 %s1217, 64
                %s1220 = smul.u32 8, %s1219
                %s1221 = scalar_lea.vmem %s880, %s1220 [#allocation2]
                %s1222 = smul.u32 8, %s1219
                %s1223 = scalar_lea.vmem %s891, %s1222
                // While loop
                $region70: #{tpu_custom_call.1} parent=61 // loop_pre_header
                  _
                $region71: #{tpu_custom_call.1} parent=61 // loop_header
                  %s1225 = sphi 0, %s1227
                  %p1226 = scmp.ge.s32.totalorder %s1225, %s1218
                  %s1230 = sphi 0, %s1237
                  %s1231 = sphi %s1221, %s1240
                  %s1232 = sphi %s1223, %s1241
                $region72: #{tpu_custom_call.1} parent=61 // loop_header_branch
                  %1229 = sbr.rel (%p1226) target = $region76
                $region73: #{tpu_custom_call.1} parent=61 // loop_body
                  %v1233 = vld [vmem:[%s1231] sm:$0xff]
                  %1234 = vst [vmem:[%s1232] sm:$0xff] %v1233
                  %s1235 = sadd.s32 1, %s1230
                  %p1236 = scmp.ge.s32.totalorder %s1235, %s1218
                  %s1237 = scalar_select %p1236, 0, %s1235
                  %s1238 = smul.u32 %s1237, 8
                  %s1239 = smul.u32 %s1237, 8
                  %s1240 = scalar_lea.vmem %s1221, %s1238 [#allocation2]
                  %s1241 = scalar_lea.vmem %s1223, %s1239
                $region74: #{tpu_custom_call.1} parent=61 // loop_footer
                  %s1227 = sadd.s32 %s1225, 1
                $region75: #{tpu_custom_call.1} parent=61 // loop_footer_branch
                  %1224 = sbr.rel target = $region71
                $region76: #{tpu_custom_call.1} parent=61 // loop_exit
                  _
              $region62: #{tpu_custom_call.1} parent=39 // pred_fallthru
                _
              // Predicated region
              $region77: #{tpu_custom_call.1} parent=39 // pred_check
                _
              $region78: #{tpu_custom_call.1} parent=39 // pred_check_branch
                %1243 = sbr.rel target = $region80
              $region79: #{tpu_custom_call.1} parent=39 // pred_region
                _
              $region80: #{tpu_custom_call.1} parent=39 // pred_fallthru
                _
            $region40: #{tpu_custom_call.1} parent=35 // pred_fallthru
              _
            // Predicated region
            $region41: #{tpu_custom_call.1} parent=35 // pred_check
              _
            $region42: #{tpu_custom_call.1} parent=35 // pred_check_branch
              %898 = sbr.rel target = $region44
            $region43: #{tpu_custom_call.1} parent=35 // pred_region
              %s900 = sshrl.u32 %s887, 6
              // While loop
              $region45: #{tpu_custom_call.1} parent=43 // loop_pre_header
                _
              $region46: #{tpu_custom_call.1} parent=43 // loop_header
                %s902 = sphi 0, %s904
                %p903 = scmp.ge.s32.totalorder %s902, %s900
                %s907 = sphi 0, %s1040
                %s908 = sphi %s880, %s1043
                %s909 = sphi %s891, %s1044
              $region47: #{tpu_custom_call.1} parent=43 // loop_header_branch
                %906 = sbr.rel (%p903) target = $region51
              $region48: #{tpu_custom_call.1} parent=43 // loop_body
                %v910 = vld [vmem:[%s908] sm:$0xff]
                %911 = vst [vmem:[%s909] sm:$0xff] %v910
                %v912 = vld [vmem:[%s908 + $0x8] sm:$0xff]
                %913 = vst [vmem:[%s909 + $0x8] sm:$0xff] %v912
                %v914 = vld [vmem:[%s908 + $0x10] sm:$0xff]
                %915 = vst [vmem:[%s909 + $0x10] sm:$0xff] %v914
                %v916 = vld [vmem:[%s908 + $0x18] sm:$0xff]
                %917 = vst [vmem:[%s909 + $0x18] sm:$0xff] %v916
                %v918 = vld [vmem:[%s908 + $0x20] sm:$0xff]
                %919 = vst [vmem:[%s909 + $0x20] sm:$0xff] %v918
                %v920 = vld [vmem:[%s908 + $0x28] sm:$0xff]
                %921 = vst [vmem:[%s909 + $0x28] sm:$0xff] %v920
                %v922 = vld [vmem:[%s908 + $0x30] sm:$0xff]
                %923 = vst [vmem:[%s909 + $0x30] sm:$0xff] %v922
                %v924 = vld [vmem:[%s908 + $0x38] sm:$0xff]
                %925 = vst [vmem:[%s909 + $0x38] sm:$0xff] %v924
                %v926 = vld [vmem:[%s908 + $0x40] sm:$0xff]
                %927 = vst [vmem:[%s909 + $0x40] sm:$0xff] %v926
                %v928 = vld [vmem:[%s908 + $0x48] sm:$0xff]
                %929 = vst [vmem:[%s909 + $0x48] sm:$0xff] %v928
                %v930 = vld [vmem:[%s908 + $0x50] sm:$0xff]
                %931 = vst [vmem:[%s909 + $0x50] sm:$0xff] %v930
                %v932 = vld [vmem:[%s908 + $0x58] sm:$0xff]
                %933 = vst [vmem:[%s909 + $0x58] sm:$0xff] %v932
                %v934 = vld [vmem:[%s908 + $0x60] sm:$0xff]
                %935 = vst [vmem:[%s909 + $0x60] sm:$0xff] %v934
                %v936 = vld [vmem:[%s908 + $0x68] sm:$0xff]
                %937 = vst [vmem:[%s909 + $0x68] sm:$0xff] %v936
                %v938 = vld [vmem:[%s908 + $0x70] sm:$0xff]
                %939 = vst [vmem:[%s909 + $0x70] sm:$0xff] %v938
                %v940 = vld [vmem:[%s908 + $0x78] sm:$0xff]
                %941 = vst [vmem:[%s909 + $0x78] sm:$0xff] %v940
                %v942 = vld [vmem:[%s908 + $0x80] sm:$0xff]
                %943 = vst [vmem:[%s909 + $0x80] sm:$0xff] %v942
                %v944 = vld [vmem:[%s908 + $0x88] sm:$0xff]
                %945 = vst [vmem:[%s909 + $0x88] sm:$0xff] %v944
                %v946 = vld [vmem:[%s908 + $0x90] sm:$0xff]
                %947 = vst [vmem:[%s909 + $0x90] sm:$0xff] %v946
                %v948 = vld [vmem:[%s908 + $0x98] sm:$0xff]
                %949 = vst [vmem:[%s909 + $0x98] sm:$0xff] %v948
                %v950 = vld [vmem:[%s908 + $0xa0] sm:$0xff]
                %951 = vst [vmem:[%s909 + $0xa0] sm:$0xff] %v950
                %v952 = vld [vmem:[%s908 + $0xa8] sm:$0xff]
                %953 = vst [vmem:[%s909 + $0xa8] sm:$0xff] %v952
                %v954 = vld [vmem:[%s908 + $0xb0] sm:$0xff]
                %955 = vst [vmem:[%s909 + $0xb0] sm:$0xff] %v954
                %v956 = vld [vmem:[%s908 + $0xb8] sm:$0xff]
                %957 = vst [vmem:[%s909 + $0xb8] sm:$0xff] %v956
                %v958 = vld [vmem:[%s908 + $0xc0] sm:$0xff]
                %959 = vst [vmem:[%s909 + $0xc0] sm:$0xff] %v958
                %v960 = vld [vmem:[%s908 + $0xc8] sm:$0xff]
                %961 = vst [vmem:[%s909 + $0xc8] sm:$0xff] %v960
                %v962 = vld [vmem:[%s908 + $0xd0] sm:$0xff]
                %963 = vst [vmem:[%s909 + $0xd0] sm:$0xff] %v962
                %v964 = vld [vmem:[%s908 + $0xd8] sm:$0xff]
                %965 = vst [vmem:[%s909 + $0xd8] sm:$0xff] %v964
                %v966 = vld [vmem:[%s908 + $0xe0] sm:$0xff]
                %967 = vst [vmem:[%s909 + $0xe0] sm:$0xff] %v966
                %v968 = vld [vmem:[%s908 + $0xe8] sm:$0xff]
                %969 = vst [vmem:[%s909 + $0xe8] sm:$0xff] %v968
                %v970 = vld [vmem:[%s908 + $0xf0] sm:$0xff]
                %971 = vst [vmem:[%s909 + $0xf0] sm:$0xff] %v970
                %v972 = vld [vmem:[%s908 + $0xf8] sm:$0xff]
                %973 = vst [vmem:[%s909 + $0xf8] sm:$0xff] %v972
                %v974 = vld [vmem:[%s908 + $0x100] sm:$0xff]
                %975 = vst [vmem:[%s909 + $0x100] sm:$0xff] %v974
                %v976 = vld [vmem:[%s908 + $0x108] sm:$0xff]
                %977 = vst [vmem:[%s909 + $0x108] sm:$0xff] %v976
                %v978 = vld [vmem:[%s908 + $0x110] sm:$0xff]
                %979 = vst [vmem:[%s909 + $0x110] sm:$0xff] %v978
                %v980 = vld [vmem:[%s908 + $0x118] sm:$0xff]
                %981 = vst [vmem:[%s909 + $0x118] sm:$0xff] %v980
                %v982 = vld [vmem:[%s908 + $0x120] sm:$0xff]
                %983 = vst [vmem:[%s909 + $0x120] sm:$0xff] %v982
                %v984 = vld [vmem:[%s908 + $0x128] sm:$0xff]
                %985 = vst [vmem:[%s909 + $0x128] sm:$0xff] %v984
                %v986 = vld [vmem:[%s908 + $0x130] sm:$0xff]
                %987 = vst [vmem:[%s909 + $0x130] sm:$0xff] %v986
                %v988 = vld [vmem:[%s908 + $0x138] sm:$0xff]
                %989 = vst [vmem:[%s909 + $0x138] sm:$0xff] %v988
                %v990 = vld [vmem:[%s908 + $0x140] sm:$0xff]
                %991 = vst [vmem:[%s909 + $0x140] sm:$0xff] %v990
                %v992 = vld [vmem:[%s908 + $0x148] sm:$0xff]
                %993 = vst [vmem:[%s909 + $0x148] sm:$0xff] %v992
                %v994 = vld [vmem:[%s908 + $0x150] sm:$0xff]
                %995 = vst [vmem:[%s909 + $0x150] sm:$0xff] %v994
                %v996 = vld [vmem:[%s908 + $0x158] sm:$0xff]
                %997 = vst [vmem:[%s909 + $0x158] sm:$0xff] %v996
                %v998 = vld [vmem:[%s908 + $0x160] sm:$0xff]
                %999 = vst [vmem:[%s909 + $0x160] sm:$0xff] %v998
                %v1000 = vld [vmem:[%s908 + $0x168] sm:$0xff]
                %1001 = vst [vmem:[%s909 + $0x168] sm:$0xff] %v1000
                %v1002 = vld [vmem:[%s908 + $0x170] sm:$0xff]
                %1003 = vst [vmem:[%s909 + $0x170] sm:$0xff] %v1002
                %v1004 = vld [vmem:[%s908 + $0x178] sm:$0xff]
                %1005 = vst [vmem:[%s909 + $0x178] sm:$0xff] %v1004
                %v1006 = vld [vmem:[%s908 + $0x180] sm:$0xff]
                %1007 = vst [vmem:[%s909 + $0x180] sm:$0xff] %v1006
                %v1008 = vld [vmem:[%s908 + $0x188] sm:$0xff]
                %1009 = vst [vmem:[%s909 + $0x188] sm:$0xff] %v1008
                %v1010 = vld [vmem:[%s908 + $0x190] sm:$0xff]
                %1011 = vst [vmem:[%s909 + $0x190] sm:$0xff] %v1010
                %v1012 = vld [vmem:[%s908 + $0x198] sm:$0xff]
                %1013 = vst [vmem:[%s909 + $0x198] sm:$0xff] %v1012
                %v1014 = vld [vmem:[%s908 + $0x1a0] sm:$0xff]
                %1015 = vst [vmem:[%s909 + $0x1a0] sm:$0xff] %v1014
                %v1016 = vld [vmem:[%s908 + $0x1a8] sm:$0xff]
                %1017 = vst [vmem:[%s909 + $0x1a8] sm:$0xff] %v1016
                %v1018 = vld [vmem:[%s908 + $0x1b0] sm:$0xff]
                %1019 = vst [vmem:[%s909 + $0x1b0] sm:$0xff] %v1018
                %v1020 = vld [vmem:[%s908 + $0x1b8] sm:$0xff]
                %1021 = vst [vmem:[%s909 + $0x1b8] sm:$0xff] %v1020
                %v1022 = vld [vmem:[%s908 + $0x1c0] sm:$0xff]
                %1023 = vst [vmem:[%s909 + $0x1c0] sm:$0xff] %v1022
                %v1024 = vld [vmem:[%s908 + $0x1c8] sm:$0xff]
                %1025 = vst [vmem:[%s909 + $0x1c8] sm:$0xff] %v1024
                %v1026 = vld [vmem:[%s908 + $0x1d0] sm:$0xff]
                %1027 = vst [vmem:[%s909 + $0x1d0] sm:$0xff] %v1026
                %v1028 = vld [vmem:[%s908 + $0x1d8] sm:$0xff]
                %1029 = vst [vmem:[%s909 + $0x1d8] sm:$0xff] %v1028
                %v1030 = vld [vmem:[%s908 + $0x1e0] sm:$0xff]
                %1031 = vst [vmem:[%s909 + $0x1e0] sm:$0xff] %v1030
                %v1032 = vld [vmem:[%s908 + $0x1e8] sm:$0xff]
                %1033 = vst [vmem:[%s909 + $0x1e8] sm:$0xff] %v1032
                %v1034 = vld [vmem:[%s908 + $0x1f0] sm:$0xff]
                %1035 = vst [vmem:[%s909 + $0x1f0] sm:$0xff] %v1034
                %v1036 = vld [vmem:[%s908 + $0x1f8] sm:$0xff]
                %1037 = vst [vmem:[%s909 + $0x1f8] sm:$0xff] %v1036
                %s1038 = sadd.s32 1, %s907
                %p1039 = scmp.ge.s32.totalorder %s1038, %s900
                %s1040 = scalar_select %p1039, 0, %s1038
                %s1041 = smul.u32 %s1040, 512
                %s1042 = smul.u32 %s1040, 512
                %s1043 = scalar_lea.vmem %s880, %s1041 [#allocation2]
                %s1044 = scalar_lea.vmem %s891, %s1042
              $region49: #{tpu_custom_call.1} parent=43 // loop_footer
                %s904 = sadd.s32 %s902, 1
              $region50: #{tpu_custom_call.1} parent=43 // loop_footer_branch
                %901 = sbr.rel target = $region46
              $region51: #{tpu_custom_call.1} parent=43 // loop_exit
                _
              %s1045 = sshrl.u32 %s887, 6
              %s1046 = sand.u32 %s887, 63
              %s1047 = smul.u32 %s1045, 64
              %s1048 = smul.u32 8, %s1047
              %s1049 = scalar_lea.vmem %s880, %s1048 [#allocation2]
              %s1050 = smul.u32 8, %s1047
              %s1051 = scalar_lea.vmem %s891, %s1050
              // While loop
              $region52: #{tpu_custom_call.1} parent=43 // loop_pre_header
                _
              $region53: #{tpu_custom_call.1} parent=43 // loop_header
                %s1053 = sphi 0, %s1055
                %p1054 = scmp.ge.s32.totalorder %s1053, %s1046
                %s1058 = sphi 0, %s1065
                %s1059 = sphi %s1049, %s1068
                %s1060 = sphi %s1051, %s1069
              $region54: #{tpu_custom_call.1} parent=43 // loop_header_branch
                %1057 = sbr.rel (%p1054) target = $region58
              $region55: #{tpu_custom_call.1} parent=43 // loop_body
                %v1061 = vld [vmem:[%s1059] sm:$0xff]
                %1062 = vst [vmem:[%s1060] sm:$0xff] %v1061
                %s1063 = sadd.s32 1, %s1058
                %p1064 = scmp.ge.s32.totalorder %s1063, %s1046
                %s1065 = scalar_select %p1064, 0, %s1063
                %s1066 = smul.u32 %s1065, 8
                %s1067 = smul.u32 %s1065, 8
                %s1068 = scalar_lea.vmem %s1049, %s1066 [#allocation2]
                %s1069 = scalar_lea.vmem %s1051, %s1067
              $region56: #{tpu_custom_call.1} parent=43 // loop_footer
                %s1055 = sadd.s32 %s1053, 1
              $region57: #{tpu_custom_call.1} parent=43 // loop_footer_branch
                %1052 = sbr.rel target = $region53
              $region58: #{tpu_custom_call.1} parent=43 // loop_exit
                _
            $region44: #{tpu_custom_call.1} parent=35 // pred_fallthru
              _
          $region36: #{tpu_custom_call.1} parent=31 // pred_fallthru
            _
          %1244 = vnop
        $region32: #{tpu_custom_call.1} parent=27 // pred_fallthru
          _
      $region28: #{tpu_custom_call.1} parent=5 // pred_fallthru
        _
      %p1245 = scmp.le.s32.totalorder 2, %s8
      // Predicated region
      $region81: #{tpu_custom_call.1} parent=5 // pred_check
        %p1246 = pneg %p1245
      $region82: #{tpu_custom_call.1} parent=5 // pred_check_branch
        %1248 = sbr.rel (%p1246) target = $region84
      $region83: #{tpu_custom_call.1} parent=5 // pred_region
        %s1249 = ssub.s32 %s8, 2
        // Predicated region
        $region85: #{tpu_custom_call.1} parent=83 // pred_check
          %p1250 = pneg %p84
        $region86: #{tpu_custom_call.1} parent=83 // pred_check_branch
          %1252 = sbr.rel (%p1250) target = $region88
        $region87: #{tpu_custom_call.1} parent=83 // pred_region
          %s1253 = sand.u32 %s69, 1
          %s1254 = sand.u32 %s69, 1
          %s1255 = smul.addr %s1254, 512
          %s1256 = scalar_lea.vmem [#allocation2], %s1255
        $region88: #{tpu_custom_call.1} parent=83 // pred_fallthru
          _
      $region84: #{tpu_custom_call.1} parent=5 // pred_fallthru
        _
    $region6: #{tpu_custom_call.1} parent=1 // loop_footer
      %s12 = sadd.s32 1, %s8
    $region7: #{tpu_custom_call.1} parent=1 // loop_footer_branch
      %7 = sbr.rel target = $region3
    $region8: #{tpu_custom_call.1} parent=1 // loop_exit
      _

</llo_original>
